<compile_context>
chip_gen: v7x
topology: tpu7x:2x2x1
jax: 0.10.0
libtpu: 0.0.40
codegen_flags: <defaults>
</compile_context>

<pallas_src>
import jax
import jax.numpy as jnp
from jax.experimental import pallas as pl
from jax.experimental.pallas import tpu as pltpu


def _round_up(n, m):
    return ((n + m - 1) // m) * m


# -----------------------------------------------------------------------------
# Kernel 1: per-image pixel normalization   x * (1/std) + (-mean/std)
# Layout: (B, C, H, W), H on sublanes / W on lanes, grid=(B, C, H-tiles).
# Per-channel scale/bias are scalars in SMEM indexed by the channel grid axis.
# -----------------------------------------------------------------------------
def _normalize_kernel(x_ref, scale_ref, bias_ref, o_ref):
    c = pl.program_id(1)
    o_ref[0, 0] = x_ref[0, 0] * scale_ref[c] + bias_ref[c]


def normalize_images(x, scale, bias, *, max_h_tile=256):
    B, C, H, W = x.shape
    th = min(max_h_tile, _round_up(H, 8))
    h_pad = _round_up(H, th)
    xf = x.astype(jnp.float32)
    if h_pad != H:
        xf = jnp.pad(xf, ((0, 0), (0, 0), (0, h_pad - H), (0, 0)))
    out = pl.pallas_call(
        _normalize_kernel,
        grid=(B, C, h_pad // th),
        in_specs=[
            pl.BlockSpec((1, 1, th, W), lambda b, c, h: (b, c, h, 0)),
            pl.BlockSpec(memory_space=pltpu.MemorySpace.SMEM),
            pl.BlockSpec(memory_space=pltpu.MemorySpace.SMEM),
        ],
        out_specs=pl.BlockSpec((1, 1, th, W), lambda b, c, h: (b, c, h, 0)),
        out_shape=jax.ShapeDtypeStruct((B, C, h_pad, W), jnp.float32),
        compiler_params=pltpu.CompilerParams(
            dimension_semantics=("parallel", "parallel", "parallel")),
    )(xf, scale, bias)
    if h_pad != H:
        out = out[:, :, :H, :]
    return out


# -----------------------------------------------------------------------------
# Kernel 2: fused Linear(256 -> 768) + LayerNorm(768)
#           (lang_in_linear + lang_in_norm applied to the visual prompt tokens)
# Row-tiled; weights / bias / gamma / beta stay resident across the grid.
# MXU fed bf16, LayerNorm math in f32; mean/var from one sum + sum-of-squares.
# -----------------------------------------------------------------------------
def _linear_ln_kernel(x_ref, w_ref, b_ref, g_ref, beta_ref, o_ref):
    y = jnp.dot(x_ref[...].astype(jnp.bfloat16), w_ref[...],
                preferred_element_type=jnp.float32)
    y = y + b_ref[...]
    d_inv = 1.0 / y.shape[-1]
    s1 = jnp.sum(y, axis=-1, keepdims=True)
    s2 = jnp.sum(y * y, axis=-1, keepdims=True)
    mu = s1 * d_inv
    var = s2 * d_inv - mu * mu
    o_ref[...] = (y - mu) * jax.lax.rsqrt(var + 1e-5) * g_ref[...] + beta_ref[...]


def linear_layernorm(x, w, b, g, beta, *, max_row_tile=256):
    B, N, Din = x.shape
    Dout = w.shape[1]
    rows = B * N
    tm = min(max_row_tile, _round_up(rows, 8))
    rows_pad = _round_up(rows, tm)
    xf = x.reshape(rows, Din).astype(jnp.float32)
    if rows_pad != rows:
        xf = jnp.pad(xf, ((0, rows_pad - rows), (0, 0)))
    out = pl.pallas_call(
        _linear_ln_kernel,
        grid=(rows_pad // tm,),
        in_specs=[
            pl.BlockSpec((tm, Din), lambda i: (i, 0)),
            pl.BlockSpec((Din, Dout), lambda i: (0, 0)),
            pl.BlockSpec((1, Dout), lambda i: (0, 0)),
            pl.BlockSpec((1, Dout), lambda i: (0, 0)),
            pl.BlockSpec((1, Dout), lambda i: (0, 0)),
        ],
        out_specs=pl.BlockSpec((tm, Dout), lambda i: (i, 0)),
        out_shape=jax.ShapeDtypeStruct((rows_pad, Dout), jnp.float32),
        compiler_params=pltpu.CompilerParams(dimension_semantics=("parallel",)),
    )(xf, w.astype(jnp.bfloat16),
      b.reshape(1, Dout).astype(jnp.float32),
      g.reshape(1, Dout).astype(jnp.float32),
      beta.reshape(1, Dout).astype(jnp.float32))
    return out[:rows].reshape(B, N, Dout)


# -----------------------------------------------------------------------------
# Kernel 3: plain LayerNorm(768)  (lang_norm on BERT features), row-tiled.
# -----------------------------------------------------------------------------
def _layernorm_kernel(x_ref, g_ref, b_ref, o_ref):
    x = x_ref[...]
    d_inv = 1.0 / x.shape[-1]
    s1 = jnp.sum(x, axis=-1, keepdims=True)
    s2 = jnp.sum(x * x, axis=-1, keepdims=True)
    mu = s1 * d_inv
    var = s2 * d_inv - mu * mu
    o_ref[...] = (x - mu) * jax.lax.rsqrt(var + 1e-5) * g_ref[...] + b_ref[...]


def layernorm(x, g, b, *, max_row_tile=256):
    B, N, D = x.shape
    rows = B * N
    tm = min(max_row_tile, _round_up(rows, 8))
    rows_pad = _round_up(rows, tm)
    xf = x.reshape(rows, D).astype(jnp.float32)
    if rows_pad != rows:
        xf = jnp.pad(xf, ((0, rows_pad - rows), (0, 0)))
    out = pl.pallas_call(
        _layernorm_kernel,
        grid=(rows_pad // tm,),
        in_specs=[
            pl.BlockSpec((tm, D), lambda i: (i, 0)),
            pl.BlockSpec((1, D), lambda i: (0, 0)),
            pl.BlockSpec((1, D), lambda i: (0, 0)),
        ],
        out_specs=pl.BlockSpec((tm, D), lambda i: (i, 0)),
        out_shape=jax.ShapeDtypeStruct((rows_pad, D), jnp.float32),
        compiler_params=pltpu.CompilerParams(dimension_semantics=("parallel",)),
    )(xf, g.reshape(1, D).astype(jnp.float32), b.reshape(1, D).astype(jnp.float32))
    return out[:rows].reshape(B, N, D)


# -----------------------------------------------------------------------------
# Kernel 4: bilinear F.interpolate (align_corners=False) fused with the
# refer_inference sigmoid, as two batched MXU matmuls over all B*Q masks:
#   stage 1:  (out_h, h)      @ (h, B*Q*w)      -> height upsample
#   stage 2:  (B*Q*out_h, w)  @ (w, out_w)      -> width upsample + sigmoid
# -----------------------------------------------------------------------------
def _bilinear_matrix(out_size, in_size):
    # PyTorch align_corners=False source-index computation (no antialias).
    i = jnp.arange(out_size, dtype=jnp.float32)
    src = (i + 0.5) * (in_size / out_size) - 0.5
    src = jnp.clip(src, 0.0, in_size - 1)
    lo = jnp.floor(src).astype(jnp.int32)
    hi = jnp.minimum(lo + 1, in_size - 1)
    w_hi = src - lo.astype(jnp.float32)
    w_lo = 1.0 - w_hi
    m = jnp.zeros((out_size, in_size), jnp.float32)
    rows = jnp.arange(out_size)
    m = m.at[rows, lo].add(w_lo)
    m = m.at[rows, hi].add(w_hi)
    return m


def _upsample_h_kernel(wh_ref, x_ref, o_ref):
    o_ref[...] = jnp.dot(wh_ref[...], x_ref[...], preferred_element_type=jnp.float32)


def _upsample_w_sigmoid_kernel(x_ref, wwt_ref, o_ref):
    y = jnp.dot(x_ref[...], wwt_ref[...], preferred_element_type=jnp.float32)
    o_ref[...] = jax.nn.sigmoid(y)


def upsample_sigmoid(masks, out_h, out_w, *, max_row_tile=256, max_lane_tile=512):
    B, Q, h, w = masks.shape
    wh = _bilinear_matrix(out_h, h)                 # (out_h, h)
    wwt = _bilinear_matrix(out_w, w).T              # (w, out_w)
    xf = masks.astype(jnp.float32)

    # ---- stage 1: height upsample, one big matmul over all masks ----
    ncols = B * Q * w
    x_flat = jnp.transpose(xf, (2, 0, 1, 3)).reshape(h, ncols)
    tm = min(max_row_tile, _round_up(out_h, 8))
    out_h_pad = _round_up(out_h, tm)
    tn = min(max_lane_tile, _round_up(ncols, 128))
    ncols_pad = _round_up(ncols, tn)
    wh_p = jnp.pad(wh, ((0, out_h_pad - out_h), (0, 0))) if out_h_pad != out_h else wh
    x_p = jnp.pad(x_flat, ((0, 0), (0, ncols_pad - ncols))) if ncols_pad != ncols else x_flat
    t = pl.pallas_call(
        _upsample_h_kernel,
        grid=(out_h_pad // tm, ncols_pad // tn),
        in_specs=[
            pl.BlockSpec((tm, h), lambda i, j: (i, 0)),
            pl.BlockSpec((h, tn), lambda i, j: (0, j)),
        ],
        out_specs=pl.BlockSpec((tm, tn), lambda i, j: (i, j)),
        out_shape=jax.ShapeDtypeStruct((out_h_pad, ncols_pad), jnp.float32),
        compiler_params=pltpu.CompilerParams(
            dimension_semantics=("parallel", "parallel")),
    )(wh_p, x_p)
    t = t[:out_h, :ncols]

    # ---- stage 2: width upsample + sigmoid, one big matmul over all masks ----
    nrows = B * Q * out_h
    t2 = t.reshape(out_h, B * Q, w).transpose(1, 0, 2).reshape(nrows, w)
    tm2 = min(max_row_tile, _round_up(nrows, 8))
    nrows_pad = _round_up(nrows, tm2)
    tn2 = min(max_lane_tile, _round_up(out_w, 128))
    out_w_pad = _round_up(out_w, tn2)
    t2_p = jnp.pad(t2, ((0, nrows_pad - nrows), (0, 0))) if nrows_pad != nrows else t2
    wwt_p = jnp.pad(wwt, ((0, 0), (0, out_w_pad - out_w))) if out_w_pad != out_w else wwt
    y = pl.pallas_call(
        _upsample_w_sigmoid_kernel,
        grid=(nrows_pad // tm2, out_w_pad // tn2),
        in_specs=[
            pl.BlockSpec((tm2, w), lambda i, j: (i, 0)),
            pl.BlockSpec((w, tn2), lambda i, j: (0, j)),
        ],
        out_specs=pl.BlockSpec((tm2, tn2), lambda i, j: (i, j)),
        out_shape=jax.ShapeDtypeStruct((nrows_pad, out_w_pad), jnp.float32),
        compiler_params=pltpu.CompilerParams(
            dimension_semantics=("parallel", "parallel")),
    )(t2_p, wwt_p)
    y = y[:nrows, :out_w]
    return y.reshape(B, Q, out_h, out_w)


# -----------------------------------------------------------------------------
# GRES wrapper with deterministically initialized parameters.
# -----------------------------------------------------------------------------
class GRESPallas:
    def __init__(self, key, *, num_prompts=20, feat_feature=256, lang_feature=768,
                 pixel_mean=(123.675, 116.28, 103.53),
                 pixel_std=(58.395, 57.12, 57.375)):
        k_vp, k_w = jax.random.split(key, 2)
        self.num_prompts = num_prompts
        self.feat_feature = feat_feature
        self.lang_feature = lang_feature

        mean = jnp.asarray(pixel_mean, jnp.float32)
        std = jnp.asarray(pixel_std, jnp.float32)
        # fused (x - mean) / std  ==  x * scale + bias
        self.pixel_scale = 1.0 / std               # (C,)
        self.pixel_bias = -mean / std              # (C,)

        # nn.Embedding(20, 256)
        self.vis_prompts = jax.random.normal(k_vp, (num_prompts, feat_feature), jnp.float32)
        # nn.Linear(256, 768)
        self.lang_in_w = jax.random.normal(k_w, (feat_feature, lang_feature), jnp.float32) * (feat_feature ** -0.5)
        self.lang_in_b = jnp.zeros((lang_feature,), jnp.float32)
        # nn.LayerNorm(768) x2
        self.lang_in_norm_g = jnp.ones((lang_feature,), jnp.float32)
        self.lang_in_norm_b = jnp.zeros((lang_feature,), jnp.float32)
        self.lang_norm_g = jnp.ones((lang_feature,), jnp.float32)
        self.lang_norm_b = jnp.zeros((lang_feature,), jnp.float32)

    def forward(self, batched_inputs):
        images = batched_inputs['image']                       # (B, 3, H, W) NCHW
        # (x - pixel_mean) / pixel_std  -> Pallas kernel (fused scale+bias)
        images = normalize_images(images, self.pixel_scale, self.pixel_bias)
        B, _, H, W = images.shape
        # TODO(synk): ImageList.from_tensors size_divisibility padding — inputs here are already divisible.

        if batched_inputs.get('lang_tokens', None) is not None:
            # TODO(synk): BERT text_encoder is an external submodule; caller supplies a stand-in lang_feat.
            lang_feat = batched_inputs['_lang_feat_standin']   # (B, L, 768)
            lang_feat = layernorm(lang_feat, self.lang_norm_g, self.lang_norm_b)
            ref_feat = jnp.transpose(lang_feat, (0, 2, 1))
            ref_mask = batched_inputs['lang_mask'][..., None]
        elif batched_inputs.get('supp_image', None) is not None:
            # target = vis_prompts.weight.unsqueeze(0).repeat(B, 1, 1)
            target = jnp.broadcast_to(self.vis_prompts[None],
                                      (B, self.num_prompts, self.feat_feature))
            # TODO(synk): backbone(supp_images) + deformable-transformer prompt_encoder are external
            # submodules; the vis_prompts target is used as the visual_tokens stand-in.
            visual_tokens = target
            visual_masks = jnp.ones((B, self.num_prompts), jnp.float32)
            # lang_in_norm(lang_in_linear(visual_tokens)) -> fused Pallas kernel
            visual_tokens = linear_layernorm(visual_tokens, self.lang_in_w, self.lang_in_b,
                                             self.lang_in_norm_g, self.lang_in_norm_b)
            ref_feat = jnp.transpose(visual_tokens, (0, 2, 1))
            ref_mask = visual_masks[..., None]
        else:
            raise ValueError("need lang_tokens or supp_image")

        # TODO(synk): self.backbone(images, ref_feat, ref_mask) and self.sem_seg_head are external
        # submodules; caller supplies deterministic stand-ins for pred_masks / nt_label.
        mask_pred_results = batched_inputs['_pred_masks_standin']   # (B, Q, h, w)
        nt_pred_results = batched_inputs['_nt_label_standin']       # (B, 2)

        # F.interpolate(..., mode='bilinear', align_corners=False) + refer_inference sigmoid (fused)
        mask_pred = upsample_sigmoid(mask_pred_results, H, W)
        # nt_label is a tiny (B, 2) tensor: a dedicated pallas_call would be pure
        # dispatch/DMA overhead, so refer_inference's sigmoid is plain jnp here.
        nt = jax.nn.sigmoid(nt_pred_results.astype(jnp.float32))

        processed_results = []
        for b in range(mask_pred.shape[0]):
            processed_results.append({'ref_seg': mask_pred[b], 'nt_label': nt[b]})
        return processed_results, ref_feat, ref_mask


# -----------------------------------------------------------------------------
# Demo
# -----------------------------------------------------------------------------
if __name__ == "__main__":
    key = jax.random.PRNGKey(0)
    ks = jax.random.split(key, 8)

    B, C, H, W = 2, 3, 64, 64          # image size divisible by size_divisibility
    Q, h_m, w_m = 4, 16, 16            # low-res pred masks from sem_seg_head
    L = 8                              # language sequence length

    model = GRESPallas(ks[0])

    image = jax.random.uniform(ks[1], (B, C, H, W), jnp.float32) * 255.0
    supp_image = jax.random.uniform(ks[2], (B, C, H, W), jnp.float32)
    supp_mask = (jax.random.uniform(ks[3], (B, H, W)) > 0.5).astype(jnp.float32)
    pred_masks_standin = jax.random.normal(ks[4], (B, Q, h_m, w_m), jnp.float32)
    nt_label_standin = jax.random.normal(ks[5], (B, 2), jnp.float32)
    lang_feat_standin = jax.random.normal(ks[6], (B, L, 768), jnp.float32)
    lang_mask = jnp.ones((B, L), jnp.float32)

    # Path B: visual-prompt (supp_image) branch
    batched_inputs_supp = {
        'image': image,
        'supp_image': supp_image,
        'supp_mask': supp_mask,
        '_pred_masks_standin': pred_masks_standin,
        '_nt_label_standin': nt_label_standin,
    }
    out_supp = model.forward(batched_inputs_supp)

    # Path A: language branch (exercises lang_norm LayerNorm kernel)
    batched_inputs_lang = {
        'image': image,
        'lang_tokens': jnp.ones((B, 1, L), jnp.int32),
        'lang_mask': lang_mask,
        '_lang_feat_standin': lang_feat_standin,
        '_pred_masks_standin': pred_masks_standin,
        '_nt_label_standin': nt_label_standin,
    }
    out_lang = model.forward(batched_inputs_lang)

    jax.block_until_ready((out_supp, out_lang))
    print("KERNEL_OK")
</pallas_src>

<mosaic_0001>
module attributes {stable_mosaic.version = 11 : i64} {
  func.func @_normalize_kernel(%arg0: i32, %arg1: i32, %arg2: i32, %arg3: memref<1x1x64x64xf32, #tpu.memory_space<vmem>>, %arg4: memref<3xf32, #tpu.memory_space<smem>>, %arg5: memref<3xf32, #tpu.memory_space<smem>>, %arg6: memref<1x1x64x64xf32, #tpu.memory_space<vmem>>) attributes {dimension_semantics = [#tpu.dimension_semantics<parallel>, #tpu.dimension_semantics<parallel>, #tpu.dimension_semantics<parallel>], iteration_bounds = array<i64: 2, 3, 1>, scalar_prefetch = 0 : i64, scratch_operands = 0 : i64, tpu.core_type = #tpu.core_type<tc>, window_params = [{transform_indices = @transform_0, window_bounds = array<i64: 1, 1, 64, 64>}, {transform_indices = @transform_1, window_bounds = array<i64: 3>}, {transform_indices = @transform_2, window_bounds = array<i64: 3>}, {transform_indices = @transform_3, window_bounds = array<i64: 1, 1, 64, 64>}]} {
    %c0 = arith.constant 0 : index
    %c0_0 = arith.constant 0 : index
    %c0_1 = arith.constant 0 : index
    %c0_2 = arith.constant 0 : index
    %0 = vector.load %arg3[%c0, %c0_0, %c0_1, %c0_2] : memref<1x1x64x64xf32, #tpu.memory_space<vmem>>, vector<1x1x64x64xf32>
    %1 = vector.shape_cast %0 : vector<1x1x64x64xf32> to vector<64x64xf32>
    %2 = arith.index_cast %arg1 : i32 to index
    %3 = memref.load %arg4[%2] : memref<3xf32, #tpu.memory_space<smem>>
    %4 = vector.broadcast %3 : f32 to vector<64x64xf32>
    %5 = arith.mulf %1, %4 : vector<64x64xf32>
    %6 = arith.index_cast %arg1 : i32 to index
    %7 = memref.load %arg5[%6] : memref<3xf32, #tpu.memory_space<smem>>
    %8 = vector.broadcast %7 : f32 to vector<64x64xf32>
    %9 = arith.addf %5, %8 : vector<64x64xf32>
    %c0_3 = arith.constant 0 : index
    %c0_4 = arith.constant 0 : index
    %c0_5 = arith.constant 0 : index
    %c0_6 = arith.constant 0 : index
    %10 = vector.load %arg6[%c0_3, %c0_4, %c0_5, %c0_6] : memref<1x1x64x64xf32, #tpu.memory_space<vmem>>, vector<1x1x64x64xf32>
    %11 = vector.shape_cast %10 : vector<1x1x64x64xf32> to vector<64x64xf32>
    %12 = vector.shape_cast %9 : vector<64x64xf32> to vector<1x1x64x64xf32>
    tpu.vector_store %arg6[%c0_3, %c0_4, %c0_5, %c0_6], %12 {strides = array<i32>} : memref<1x1x64x64xf32, #tpu.memory_space<vmem>>, vector<1x1x64x64xf32>,
    return
  }
  func.func @transform_0(%arg0: i32, %arg1: i32, %arg2: i32) -> (i32, i32, i32, i32) {
    %c0_i32 = arith.constant 0 : i32
    %c0_i32_0 = arith.constant 0 : i32
    return %arg0, %arg1, %arg2, %c0_i32 : i32, i32, i32, i32
  }
  func.func @transform_1(%arg0: i32, %arg1: i32, %arg2: i32) -> i32 {
    %c0_i32 = arith.constant 0 : i32
    %c0_i32_0 = arith.constant 0 : i32
    return %c0_i32 : i32
  }
  func.func @transform_2(%arg0: i32, %arg1: i32, %arg2: i32) -> i32 {
    %c0_i32 = arith.constant 0 : i32
    %c0_i32_0 = arith.constant 0 : i32
    return %c0_i32 : i32
  }
  func.func @transform_3(%arg0: i32, %arg1: i32, %arg2: i32) -> (i32, i32, i32, i32) {
    %c0_i32 = arith.constant 0 : i32
    %c0_i32_0 = arith.constant 0 : i32
    return %arg0, %arg1, %arg2, %c0_i32 : i32, i32, i32, i32
  }
}

</mosaic_0001>

<llo_original>
// kernel: tpu_custom_call.1
$region0: #{tpu_custom_call.1}
  #allocation0 [shape = 'u32[]', space=smem, size = 0x4, offset = 0x4, fixed_abs, tag = 'smem constant byte address 0x4 - core index']
  #allocation1 [shape = 'u32[144,128]{1,0:T(1,128)}', space=vmem, size = 0x12000, scoped, tag = 'internal scratch']
  %s0 = inlined_call_operand.hbm [shape: f32[2,3,64,64], index: 0, kind: input, shape index: {}]
  %s1 = inlined_call_operand.vmem [shape: f32[3], index: 1, kind: input, shape index: {}]
  %s2 = inlined_call_operand.vmem [shape: f32[3], index: 2, kind: input, shape index: {}]
  %s3 = inlined_call_operand.hbm [shape: f32[2,3,64,64], index: 3, kind: output, shape index: {}]
  %s4 = sld [smem:[#allocation0]]
  $region57: #{tpu_custom_call.1} parent=0
    _
  %s6 = ssub.s32 1, %s4
  %s7 = scalar_select 0, %s6, %s4
  $region1: #{tpu_custom_call.1} parent=0
    #allocation2 [shape = 'u8[65536]{0}', space=vmem, size = 0x10000, scoped, tag = 'input window, operand 0']
    #allocation3 [shape = 's32[2]{0}', space=sflag, size = 0x8, scoped, tag = 'scoped memory for tpu_custom_call.1']
    #allocation4 [shape = 's32[2]{0}', space=sflag, size = 0x8, scoped, tag = 'scoped memory for tpu_custom_call.1']
    #allocation5 [shape = 's32[2]{0}', space=sflag, size = 0x8, scoped, tag = 'scoped memory for tpu_custom_call.1']
    #allocation6 [shape = 'u8[512]{0}', space=smem, size = 0x200, scoped, tag = 'input window, operand 1, single buffered']
    #allocation7 [shape = 'u8[512]{0}', space=smem, size = 0x200, scoped, tag = 'input window, operand 2, single buffered']
    #allocation8 [shape = 's32[1]{0}', space=sflag, size = 0x4, scoped, tag = 'scoped memory for tpu_custom_call.1']
    #allocation9 [shape = 'u8[65536]{0}', space=vmem, size = 0x10000, scoped, tag = 'output window, operand 0']
    %8 = vsyncpa [#allocation3], 0
    %s9 = scalar_lea.sflag [#allocation3], 1
    %10 = vsyncpa %s9, 0
    %11 = vsyncpa [#allocation5], 0
    %12 = vsyncpa [#allocation8], 0
    %13 = vsyncpa [#allocation4], 0
    %s14 = scalar_lea.sflag [#allocation4], 1
    %15 = vsyncpa %s14, 0
    loop: start=0, step=1, limit=8
    $region2: #{tpu_custom_call.1} parent=1 // loop_pre_header
      _
    $region3: #{tpu_custom_call.1} parent=1 // loop_header
      %s17 = sphi 0, %s21
      %p18 = scmp.ge.s32.totalorder %s17, 8
      %s24 = sphi 0, %s43
      %s25 = sphi 0, %s39
      %s26 = sphi 0, %s35
      %s27 = sphi 0, %s24
      %s28 = sphi 0, %s25
      %s29 = sphi 0, %s26
      %s30 = sphi 0, %s27
      %s31 = sphi 0, %s28
      %s32 = sphi 0, %s29
      %s50 = sphi 0, %s52
      %s53 = sphi 0, %s50
      %s54 = sphi 0, %s53
      %s70 = sphi 0, %s54
      %s74 = sphi 0, %s74
      %s76 = sphi 0, %s74
      %s77 = sphi 0, %s76
      %s91 = sphi 0, %s77
      %s95 = sphi 0, %s95
      %s97 = sphi 0, %s95
      %s98 = sphi 0, %s97
      %s112 = sphi 0, %s98
      %s122 = sphi 0, %s124
      %s125 = sphi 0, %s122
      %s126 = sphi 0, %s125
      %s142 = sphi 0, %s126
    $region4: #{tpu_custom_call.1} parent=1 // loop_header_branch
      %20 = sbr.rel (%p18) target = $region8
    $region5: #{tpu_custom_call.1} parent=1 // loop_body
      %s22 = ssub.s32 %s17, 1
      %s23 = ssub.s32 %s17, 2
      %s33 = sadd.s32 1, %s26
      %p34 = scmp.ge.s32.totalorder %s33, 1
      %s35 = scalar_select %p34, 0, %s33
      %s36 = sadd.s32 1, %s25
      %s37 = scalar_select %p34, %s36, %s25
      %p38 = scmp.ge.s32.totalorder %s37, 3
      %s39 = scalar_select %p38, 0, %s37
      %s40 = sadd.s32 1, %s24
      %s41 = scalar_select %p38, %s40, %s24
      %p42 = scmp.ge.s32.totalorder %s41, 2
      %s43 = scalar_select %p42, 0, %s41
      %s44 = ssub.s32 %s24, %s43
      %s45 = ssub.s32 %s25, %s39
      %s46 = sor.u32 %s44, %s45
      %s47 = ssub.s32 %s26, %s35
      %s48 = sor.u32 %s46, %s47
      %p49 = scmp.eq.s32.totalorder %s48, 0
      %s51 = sadd.s32 %s50, 1
      %s52 = scalar_select %p49, %s50, %s51
      %p55 = pneg %p49
      %p56 = scmp.eq.s32.totalorder %s17, 5
      %p57 = por %p55, %p56
      %p58 = scmp.ne.s32.totalorder %s50, %s53
      %p59 = scmp.eq.s32.totalorder %s17, 0
      %p60 = por %p58, %p59
      %p61 = scmp.ne.s32.totalorder %s50, %s53
      %p62 = scmp.eq.s32.totalorder %s22, 5
      %p63 = por %p61, %p62
      %p64 = scmp.ne.s32.totalorder %s53, %s54
      %p65 = scmp.eq.s32.totalorder %s22, 0
      %p66 = por %p64, %p65
      %p67 = scmp.ne.s32.totalorder %s53, %s54
      %p68 = scmp.eq.s32.totalorder %s23, 5
      %p69 = por %p67, %p68
      %p71 = scmp.ne.s32.totalorder %s54, %s70
      %p72 = scmp.eq.s32.totalorder %s23, 0
      %p73 = por %p71, %p72
      %s75 = sadd.s32 %s74, 1
      %p78 = scmp.eq.s32.totalorder %s17, 5
      %p79 = scmp.ne.s32.totalorder %s74, %s76
      %p80 = scmp.eq.s32.totalorder %s17, 0
      %p81 = por %p79, %p80
      %p82 = scmp.ne.s32.totalorder %s74, %s76
      %p83 = scmp.eq.s32.totalorder %s22, 5
      %p84 = por %p82, %p83
      %p85 = scmp.ne.s32.totalorder %s76, %s77
      %p86 = scmp.eq.s32.totalorder %s22, 0
      %p87 = por %p85, %p86
      %p88 = scmp.ne.s32.totalorder %s76, %s77
      %p89 = scmp.eq.s32.totalorder %s23, 5
      %p90 = por %p88, %p89
      %p92 = scmp.ne.s32.totalorder %s77, %s91
      %p93 = scmp.eq.s32.totalorder %s23, 0
      %p94 = por %p92, %p93
      %s96 = sadd.s32 %s95, 1
      %p99 = scmp.eq.s32.totalorder %s17, 5
      %p100 = scmp.ne.s32.totalorder %s95, %s97
      %p101 = scmp.eq.s32.totalorder %s17, 0
      %p102 = por %p100, %p101
      %p103 = scmp.ne.s32.totalorder %s95, %s97
      %p104 = scmp.eq.s32.totalorder %s22, 5
      %p105 = por %p103, %p104
      %p106 = scmp.ne.s32.totalorder %s97, %s98
      %p107 = scmp.eq.s32.totalorder %s22, 0
      %p108 = por %p106, %p107
      %p109 = scmp.ne.s32.totalorder %s97, %s98
      %p110 = scmp.eq.s32.totalorder %s23, 5
      %p111 = por %p109, %p110
      %p113 = scmp.ne.s32.totalorder %s98, %s112
      %p114 = scmp.eq.s32.totalorder %s23, 0
      %p115 = por %p113, %p114
      %s116 = ssub.s32 %s24, %s43
      %s117 = ssub.s32 %s25, %s39
      %s118 = sor.u32 %s116, %s117
      %s119 = ssub.s32 %s26, %s35
      %s120 = sor.u32 %s118, %s119
      %p121 = scmp.eq.s32.totalorder %s120, 0
      %s123 = sadd.s32 %s122, 1
      %s124 = scalar_select %p121, %s122, %s123
      %p127 = pneg %p121
      %p128 = scmp.eq.s32.totalorder %s17, 5
      %p129 = por %p127, %p128
      %p130 = scmp.ne.s32.totalorder %s122, %s125
      %p131 = scmp.eq.s32.totalorder %s17, 0
      %p132 = por %p130, %p131
      %p133 = scmp.ne.s32.totalorder %s122, %s125
      %p134 = scmp.eq.s32.totalorder %s22, 5
      %p135 = por %p133, %p134
      %p136 = scmp.ne.s32.totalorder %s125, %s126
      %p137 = scmp.eq.s32.totalorder %s22, 0
      %p138 = por %p136, %p137
      %p139 = scmp.ne.s32.totalorder %s125, %s126
      %p140 = scmp.eq.s32.totalorder %s23, 5
      %p141 = por %p139, %p140
      %p143 = scmp.ne.s32.totalorder %s126, %s142
      %p144 = scmp.eq.s32.totalorder %s23, 0
      %p145 = por %p143, %p144
      %p146 = scmp.le.s32.totalorder 1, %s17
      %p147 = scmp.lt.s32.totalorder %s17, 7
      %p148 = pnand %p146, %p147
      %p149 = pneg %p148
      // Predicated region
      $region9: #{tpu_custom_call.1} parent=5 // pred_check
        _
      $region10: #{tpu_custom_call.1} parent=5 // pred_check_branch
        %151 = sbr.rel (%p148) target = $region12
      $region11: #{tpu_custom_call.1} parent=5 // pred_region
        %s152 = ssub.s32 %s17, 1
        // Predicated region
        $region13: #{tpu_custom_call.1} parent=11 // pred_check
          %p153 = pneg %p87
        $region14: #{tpu_custom_call.1} parent=11 // pred_check_branch
          %155 = sbr.rel (%p153) target = $region16
        $region15: #{tpu_custom_call.1} parent=11 // pred_region
          %s157 = ssub.s32 16, 16
          %158 = vsyncadd [#allocation5], %s157
          %s160 = sshll.u32 %s1, 4
          %s161 = int_to_ptr.vmem [resolvable:$true] %s160
          %163 = dma.vmem_to_smem %s161, 16, [#allocation6], [#allocation5]
        $region16: #{tpu_custom_call.1} parent=11 // pred_fallthru
          _
        // Predicated region
        $region17: #{tpu_custom_call.1} parent=11 // pred_check
          %p164 = pneg %p108
        $region18: #{tpu_custom_call.1} parent=11 // pred_check_branch
          %166 = sbr.rel (%p164) target = $region20
        $region19: #{tpu_custom_call.1} parent=11 // pred_region
          %s168 = ssub.s32 16, 16
          %169 = vsyncadd [#allocation8], %s168
          %s171 = sshll.u32 %s2, 4
          %s172 = int_to_ptr.vmem [resolvable:$true] %s171
          %174 = dma.vmem_to_smem %s172, 16, [#allocation7], [#allocation8]
        $region20: #{tpu_custom_call.1} parent=11 // pred_fallthru
          _
      $region12: #{tpu_custom_call.1} parent=5 // pred_fallthru
        _
      %p175 = scmp.lt.s32.totalorder %s17, 6
      // Predicated region
      $region21: #{tpu_custom_call.1} parent=5 // pred_check
        %p176 = pneg %p175
      $region22: #{tpu_custom_call.1} parent=5 // pred_check_branch
        %178 = sbr.rel (%p176) target = $region24
      $region23: #{tpu_custom_call.1} parent=5 // pred_region
        // Predicated region
        $region25: #{tpu_custom_call.1} parent=23 // pred_check
          %p179 = pneg %p60
        $region26: #{tpu_custom_call.1} parent=23 // pred_check_branch
          %181 = sbr.rel (%p179) target = $region28
        $region27: #{tpu_custom_call.1} parent=23 // pred_region
          %s182 = sand.u32 %s50, 1
          %s183 = scalar_lea.sflag [#allocation3], %s182
          %s184 = sand.u32 %s50, 1
          %s185 = smul.addr %s184, 64
          %s186 = scalar_lea.vmem [#allocation2], %s185
          %s187 = smul.u32 8, %s26
          %s189 = ssub.s32 1024, 1024
          %190 = vsyncadd %s183, %s189
          %s191 = smul.addr %s25, 8
          %s192 = sadd.s32 %s187, %s191
          %s193 = smul.addr %s24, 24
          %s194 = sadd.s32 %s192, %s193
          %s195 = smul.addr %s194, 128
          %s196 = scalar_lea.hbm %s0, %s195
          %s197 = sshll.u32 %s186, 4
          %s198 = int_to_ptr.vmem [resolvable:$true] %s197
          %203 = dma.hbm_to_vmem [thread:$0]  %s196, 1024, %s198, %s183, 128, 128, 8
        $region28: #{tpu_custom_call.1} parent=23 // pred_fallthru
          _
      $region24: #{tpu_custom_call.1} parent=5 // pred_fallthru
        _
      %p204 = scmp.le.s32.totalorder 1, %s17
      %p205 = scmp.lt.s32.totalorder %s17, 7
      %p206 = pnand %p204, %p205
      %p207 = pneg %p206
      // Predicated region
      $region29: #{tpu_custom_call.1} parent=5 // pred_check
        _
      $region30: #{tpu_custom_call.1} parent=5 // pred_check_branch
        %209 = sbr.rel (%p206) target = $region32
      $region31: #{tpu_custom_call.1} parent=5 // pred_region
        %s210 = ssub.s32 %s17, 1
        %s211 = sand.u32 %s53, 1
        %s212 = scalar_lea.sflag [#allocation3], %s211
        %s213 = sand.u32 %s53, 1
        %s214 = smul.addr %s213, 64
        %s215 = scalar_lea.vmem [#allocation2], %s214
        // Predicated region
        $region33: #{tpu_custom_call.1} parent=31 // pred_check
          %p216 = pneg %p66
        $region34: #{tpu_custom_call.1} parent=31 // pred_check_branch
          %218 = sbr.rel (%p216) target = $region36
        $region35: #{tpu_custom_call.1} parent=31 // pred_region
          %219 = dma.done %s212, 1024
        $region36: #{tpu_custom_call.1} parent=31 // pred_fallthru
          _
        // Predicated region
        $region37: #{tpu_custom_call.1} parent=31 // pred_check
          %p220 = pneg %p87
        $region38: #{tpu_custom_call.1} parent=31 // pred_check_branch
          %222 = sbr.rel (%p220) target = $region40
        $region39: #{tpu_custom_call.1} parent=31 // pred_region
          %223 = dma.done [#allocation5], 16
        $region40: #{tpu_custom_call.1} parent=31 // pred_fallthru
          _
        // Predicated region
        $region41: #{tpu_custom_call.1} parent=31 // pred_check
          %p224 = pneg %p108
        $region42: #{tpu_custom_call.1} parent=31 // pred_check_branch
          %226 = sbr.rel (%p224) target = $region44
        $region43: #{tpu_custom_call.1} parent=31 // pred_region
          %227 = dma.done [#allocation8], 16
        $region44: #{tpu_custom_call.1} parent=31 // pred_fallthru
          _
        %228 = sfence
        %s229 = sand.u32 %s53, 1
        %s230 = scalar_lea.sflag [#allocation3], %s229
        %s231 = sand.u32 %s53, 1
        %s232 = smul.addr %s231, 64
        %s233 = scalar_lea.vmem [#allocation2], %s232
        %p234 = pneg %p66
        %p235 = pneg %p63
        %p236 = pneg %p87
        %p237 = pneg %p84
        %p238 = pneg %p108
        %p239 = pneg %p105
        %p240 = pneg %p138
        %p241 = pneg %p135
        %s242 = sand.u32 %s125, 1
        %s243 = scalar_lea.sflag [#allocation4], %s242
        %s244 = sand.u32 %s125, 1
        %s245 = smul.addr %s244, 64
        %s246 = scalar_lea.vmem [#allocation9], %s245
        %s247 = smul.u32 8, %s29
        %s248 = smul.u32 8, %s29
        %v249 = vld [vmem:[%s215] sm:$0xff]
        %v250 = vld [vmem:[%s215 + $0x8] sm:$0xff]
        %v251 = vld [vmem:[%s215 + $0x10] sm:$0xff]
        %v252 = vld [vmem:[%s215 + $0x18] sm:$0xff]
        %v253 = vld [vmem:[%s215 + $0x20] sm:$0xff]
        %v254 = vld [vmem:[%s215 + $0x28] sm:$0xff]
        %v255 = vld [vmem:[%s215 + $0x30] sm:$0xff]
        %v256 = vld [vmem:[%s215 + $0x38] sm:$0xff]
        %s257 = sld [smem:[#allocation6 + %s28]]
        %v258 = vstv %s257
        %v259 = vmul.f32 %v249, %v258
        %v260 = vmul.f32 %v250, %v258
        %v261 = vmul.f32 %v251, %v258
        %v262 = vmul.f32 %v252, %v258
        %v263 = vmul.f32 %v253, %v258
        %v264 = vmul.f32 %v254, %v258
        %v265 = vmul.f32 %v255, %v258
        %v266 = vmul.f32 %v256, %v258
        %s267 = sld [smem:[#allocation7 + %s28]]
        %v268 = vstv %s267
        %v269 = vadd.f32 %v259, %v268
        %v270 = vadd.f32 %v260, %v268
        %v271 = vadd.f32 %v261, %v268
        %v272 = vadd.f32 %v262, %v268
        %v273 = vadd.f32 %v263, %v268
        %v274 = vadd.f32 %v264, %v268
        %v275 = vadd.f32 %v265, %v268
        %v276 = vadd.f32 %v266, %v268
        %vm277 = vcmask 523264
        %278 = vst.msk [vmem:[%s246] sm:$0xff] %vm277, %v269
        %279 = vst.msk [vmem:[%s246 + $0x8] sm:$0xff] %vm277, %v270
        %280 = vst.msk [vmem:[%s246 + $0x10] sm:$0xff] %vm277, %v271
        %281 = vst.msk [vmem:[%s246 + $0x18] sm:$0xff] %vm277, %v272
        %282 = vst.msk [vmem:[%s246 + $0x20] sm:$0xff] %vm277, %v273
        %283 = vst.msk [vmem:[%s246 + $0x28] sm:$0xff] %vm277, %v274
        %284 = vst.msk [vmem:[%s246 + $0x30] sm:$0xff] %vm277, %v275
        %285 = vst.msk [vmem:[%s246 + $0x38] sm:$0xff] %vm277, %v276
        %s286 = sand.u32 %s125, 1
        %s287 = scalar_lea.sflag [#allocation4], %s286
        %s288 = sand.u32 %s125, 1
        %s289 = smul.addr %s288, 64
        %s290 = scalar_lea.vmem [#allocation9], %s289
        // Predicated region
        $region45: #{tpu_custom_call.1} parent=31 // pred_check
          %p291 = pneg %p135
        $region46: #{tpu_custom_call.1} parent=31 // pred_check_branch
          %293 = sbr.rel (%p291) target = $region48
        $region47: #{tpu_custom_call.1} parent=31 // pred_region
          %s294 = smul.u32 8, %s29
          %s296 = ssub.s32 1024, 1024
          %297 = vsyncadd %s287, %s296
          %s298 = smul.addr %s28, 8
          %s299 = sadd.s32 %s294, %s298
          %s300 = smul.addr %s27, 24
          %s301 = sadd.s32 %s299, %s300
          %s302 = smul.addr %s301, 128
          %s303 = scalar_lea.hbm %s3, %s302
          %s304 = sshll.u32 %s290, 4
          %s305 = int_to_ptr.vmem [resolvable:$true] %s304
          %310 = dma.vmem_to_hbm [thread:$0]  %s305, 1024, %s303, %s287, 128, 128, 8
        $region48: #{tpu_custom_call.1} parent=31 // pred_fallthru
          _
      $region32: #{tpu_custom_call.1} parent=5 // pred_fallthru
        _
      %p311 = scmp.le.s32.totalorder 2, %s17
      // Predicated region
      $region49: #{tpu_custom_call.1} parent=5 // pred_check
        %p312 = pneg %p311
      $region50: #{tpu_custom_call.1} parent=5 // pred_check_branch
        %314 = sbr.rel (%p312) target = $region52
      $region51: #{tpu_custom_call.1} parent=5 // pred_region
        %s315 = ssub.s32 %s17, 2
        // Predicated region
        $region53: #{tpu_custom_call.1} parent=51 // pred_check
          %p316 = pneg %p141
        $region54: #{tpu_custom_call.1} parent=51 // pred_check_branch
          %318 = sbr.rel (%p316) target = $region56
        $region55: #{tpu_custom_call.1} parent=51 // pred_region
          %s319 = sand.u32 %s126, 1
          %s320 = scalar_lea.sflag [#allocation4], %s319
          %s321 = sand.u32 %s126, 1
          %s322 = smul.addr %s321, 64
          %s323 = scalar_lea.vmem [#allocation9], %s322
          %324 = dma.done %s320, 1024
        $region56: #{tpu_custom_call.1} parent=51 // pred_fallthru
          _
      $region52: #{tpu_custom_call.1} parent=5 // pred_fallthru
        _
    $region6: #{tpu_custom_call.1} parent=1 // loop_footer
      %s21 = sadd.s32 1, %s17
    $region7: #{tpu_custom_call.1} parent=1 // loop_footer_branch
      %16 = sbr.rel target = $region3
    $region8: #{tpu_custom_call.1} parent=1 // loop_exit
      _
    %325 = vsyncpa [#allocation3], 1
    %s326 = scalar_lea.sflag [#allocation3], 1
    %327 = vsyncpa %s326, 1
    %328 = vsyncpa [#allocation4], 1
    %s329 = scalar_lea.sflag [#allocation4], 1
    %330 = vsyncpa %s329, 1
    %331 = vsyncpa [#allocation5], 1
    %s332 = scalar_lea.sflag [#allocation5], 1
    %333 = vsyncpa %s332, 1
    %334 = vsyncpa [#allocation8], 1

</llo_original>
